<compile_context>
chip_gen: v7x
topology: tpu7x:2x2x1
jax: 0.10.0
libtpu: 0.0.40
codegen_flags: <defaults>
</compile_context>

<pallas_src>
import jax
import jax.numpy as jnp
from jax.experimental import pallas as pl
from jax.experimental.pallas import tpu as pltpu


# ----------------------------- Pallas kernel -------------------------------

def _mlp3_kernel(obs_ref, w0_ref, b0_ref, w1_ref, b1_ref, w2_ref, b2_ref,
                 out_ref):
    """Fused 3-layer MLP: tanh(x@W0+b0) -> tanh(.@W1+b1) -> .@W2+b2."""
    x = obs_ref[...].astype(jnp.float32)
    h0 = jnp.tanh(
        jnp.dot(x, w0_ref[...], preferred_element_type=jnp.float32)
        + b0_ref[...])
    h1 = jnp.tanh(
        jnp.dot(h0, w1_ref[...], preferred_element_type=jnp.float32)
        + b1_ref[...])
    y = (jnp.dot(h1, w2_ref[...], preferred_element_type=jnp.float32)
         + b2_ref[...])
    out_ref[...] = y.astype(out_ref.dtype)


def _round_up(x, m):
    return ((x + m - 1) // m) * m


def mlp_forward(obs, params, *, max_batch_tile=1024):
    """Run the fused MLP kernel over the batch.

    obs:    [N, obs_dim] float32 (any N; padded internally)
    params: dict with w0 [obs_dim,H0], b0 [1,H0], w1 [H0,H1], b1 [1,H1],
            w2 [H1,out], b2 [1,out]
    returns [N, out] float32
    """
    n, obs_dim = obs.shape
    h0 = params["w0"].shape[1]
    h1 = params["w1"].shape[1]
    out_dim = params["w2"].shape[1]

    # Large batch tile (multiple of 8) to amortize the ~0.35us per-grid-step
    # overhead; for realistic RL batches (>2*tile) the grid has >=2 steps so
    # the "parallel" batch axis can also be split across v7x's two TCs.
    # VMEM per step stays tiny (<<1 MiB for these widths), well under the
    # 32 MiB scoped default on every generation, so no vmem_limit override.
    tile = min(_round_up(n, 8), max_batch_tile)
    n_pad = _round_up(n, tile)
    obs_p = obs if n_pad == n else jnp.pad(obs, ((0, n_pad - n), (0, 0)))
    grid = (n_pad // tile,)

    def full(shape):
        # whole-array block; index_map is grid-invariant so Pallas only DMAs
        # the weights once (no per-step re-fetch).
        return pl.BlockSpec(shape, lambda i: (0, 0))

    out = pl.pallas_call(
        _mlp3_kernel,
        out_shape=jax.ShapeDtypeStruct((n_pad, out_dim), jnp.float32),
        grid=grid,
        in_specs=[
            pl.BlockSpec((tile, obs_dim), lambda i: (i, 0)),
            full((obs_dim, h0)), full((1, h0)),
            full((h0, h1)), full((1, h1)),
            full((h1, out_dim)), full((1, out_dim)),
        ],
        out_specs=pl.BlockSpec((tile, out_dim), lambda i: (i, 0)),
        compiler_params=pltpu.CompilerParams(
            dimension_semantics=("parallel",)),
    )(obs_p, params["w0"], params["b0"], params["w1"], params["b1"],
      params["w2"], params["b2"])
    return out[:n]


# ----------------------------- OnPolicy module ------------------------------

def _block_diag(a, b):
    top = jnp.concatenate([a, jnp.zeros((a.shape[0], b.shape[1]), a.dtype)], 1)
    bot = jnp.concatenate([jnp.zeros((b.shape[0], a.shape[1]), b.dtype), b], 1)
    return jnp.concatenate([top, bot], 0)


class OnPolicyPallas:
    """JAX/Pallas re-implementation of OnPolicy.forward (discrete policy).

    The policy (logits) net and the baseline net are packed into one
    block-diagonal MLP so a single fused kernel produces
    [logits | baseline] per observation.
    """

    def __init__(self, config, key):
        self.obs_dim = config["obs_dim"]
        self.act_dim = config["act_dim"]
        self.layers = config["layers"]          # e.g. [32, 32]
        self.discrete = config["discrete"]
        assert self.discrete, "kernel implements the discrete (Categorical) head"
        assert len(self.layers) == 2 and self.layers[0] == self.layers[1], \
            "fused kernel assumes two equal hidden layers"
        h = self.layers[0]

        def init_linear(k, fan_in, fan_out):
            kw, kb = jax.random.split(k)
            bound = 1.0 / jnp.sqrt(fan_in)
            w = jax.random.uniform(kw, (fan_in, fan_out), jnp.float32,
                                   -bound, bound)
            b = jax.random.uniform(kb, (1, fan_out), jnp.float32,
                                   -bound, bound)
            return w, b

        ks = jax.random.split(key, 6)
        # policy (logits) net: obs_dim -> h -> h -> act_dim
        w0, b0 = init_linear(ks[0], self.obs_dim, h)
        w1, b1 = init_linear(ks[1], h, h)
        w2, b2 = init_linear(ks[2], h, self.act_dim)
        self.logits_params = dict(w0=w0, b0=b0, w1=w1, b1=b1, w2=w2, b2=b2)
        # baseline net: obs_dim -> h -> h -> 1
        v0, c0 = init_linear(ks[3], self.obs_dim, h)
        v1, c1 = init_linear(ks[4], h, h)
        v2, c2 = init_linear(ks[5], h, 1)
        self.baseline_params = dict(w0=v0, b0=c0, w1=v1, b1=c1, w2=v2, b2=c2)

        # Pack the two heads into one block-diagonal net (done once at init):
        #   obs_dim -> 2h -> 2h -> (act_dim + 1)
        # hidden columns [:h] carry the policy, [h:] carry the baseline;
        # output columns [:act_dim] are logits, column act_dim is the value.
        # This keeps the output lane-packed (one store stream) and lets one
        # pallas_call / one obs DMA serve both heads.
        # TODO(synk): optionally store packed weights/obs as bf16 on v6e/v7x
        # (keep f32 accumulation); kept f32 here for v5e compatibility.
        self.fused_params = dict(
            w0=jnp.concatenate([w0, v0], axis=1),
            b0=jnp.concatenate([b0, c0], axis=1),
            w1=_block_diag(w1, v1),
            b1=jnp.concatenate([b1, c1], axis=1),
            w2=_block_diag(w2, v2),
            b2=jnp.concatenate([b2, c2], axis=1),
        )

    def forward_and_baseline(self, obs):
        """One fused kernel call -> (logits [N, act_dim], baseline [N])."""
        out = mlp_forward(obs, self.fused_params)
        return out[:, :self.act_dim], out[:, self.act_dim]

    def forward(self, obs):
        """Returns the Categorical logits [N, act_dim] (the distribution's
        full parameterization)."""
        return self.forward_and_baseline(obs)[0]

    def run_baseline_prediction(self, obs):
        """Returns baseline predictions [N]."""
        return self.forward_and_baseline(obs)[1]

    # TODO(synk): continuous branch (mean_net + logstd -> MultivariateNormal)
    # not exercised; the same fused-MLP kernel would produce the mean.


# Pure-JAX reference for validation.
def _ref_mlp(obs, p):
    h0 = jnp.tanh(obs @ p["w0"] + p["b0"])
    h1 = jnp.tanh(h0 @ p["w1"] + p["b1"])
    return h1 @ p["w2"] + p["b2"]


if __name__ == "__main__":
    config = dict(
        obs_dim=16, act_dim=8, layers=[32, 32], discrete=True,
        lr=3e-4, entropy_coeff=0.01, grad_clip=0.5, epsilon=0.2,
        activation="tanh",
    )
    key = jax.random.PRNGKey(0)
    k_params, k_obs1, k_obs2 = jax.random.split(key, 3)

    policy = OnPolicyPallas(config, k_params)

    # --- small batch (multiple of 8) ---
    obs = jax.random.normal(k_obs1, (8, config["obs_dim"]), jnp.float32)
    logits, baseline = policy.forward_and_baseline(obs)
    jax.block_until_ready(logits)
    jax.block_until_ready(baseline)

    ref_logits = _ref_mlp(obs, policy.logits_params)
    ref_base = _ref_mlp(obs, policy.baseline_params)[:, 0]
    assert logits.shape == (8, config["act_dim"])
    assert baseline.shape == (8,)
    assert jnp.allclose(logits, ref_logits, atol=1e-5, rtol=1e-5)
    assert jnp.allclose(baseline, ref_base, atol=1e-5, rtol=1e-5)

    # --- ragged batch (exercises the padding path) ---
    obs2 = jax.random.normal(k_obs2, (20, config["obs_dim"]), jnp.float32)
    logits2 = policy.forward(obs2)
    baseline2 = policy.run_baseline_prediction(obs2)
    jax.block_until_ready(logits2)
    jax.block_until_ready(baseline2)

    ref_logits2 = _ref_mlp(obs2, policy.logits_params)
    ref_base2 = _ref_mlp(obs2, policy.baseline_params)[:, 0]
    assert logits2.shape == (20, config["act_dim"])
    assert baseline2.shape == (20,)
    assert jnp.allclose(logits2, ref_logits2, atol=1e-5, rtol=1e-5)
    assert jnp.allclose(baseline2, ref_base2, atol=1e-5, rtol=1e-5)

    print("KERNEL_OK")
</pallas_src>

<mosaic_0001>
module attributes {stable_mosaic.version = 11 : i64} {
  func.func @_mlp3_kernel(%arg0: i32, %arg1: memref<8x16xf32, #tpu.memory_space<vmem>>, %arg2: memref<16x64xf32, #tpu.memory_space<vmem>>, %arg3: memref<1x64xf32, #tpu.memory_space<vmem>>, %arg4: memref<64x64xf32, #tpu.memory_space<vmem>>, %arg5: memref<1x64xf32, #tpu.memory_space<vmem>>, %arg6: memref<64x9xf32, #tpu.memory_space<vmem>>, %arg7: memref<1x9xf32, #tpu.memory_space<vmem>>, %arg8: memref<8x9xf32, #tpu.memory_space<vmem>>) attributes {dimension_semantics = [#tpu.dimension_semantics<parallel>], iteration_bounds = array<i64: 1>, scalar_prefetch = 0 : i64, scratch_operands = 0 : i64, tpu.core_type = #tpu.core_type<tc>, window_params = [{transform_indices = @transform_0, window_bounds = array<i64: 8, 16>}, {pipeline_mode = #tpu.pipeline_mode<synchronous>, transform_indices = @transform_1, window_bounds = array<i64: 16, 64>}, {pipeline_mode = #tpu.pipeline_mode<synchronous>, transform_indices = @transform_2, window_bounds = array<i64: 1, 64>}, {pipeline_mode = #tpu.pipeline_mode<synchronous>, transform_indices = @transform_3, window_bounds = array<i64: 64, 64>}, {pipeline_mode = #tpu.pipeline_mode<synchronous>, transform_indices = @transform_4, window_bounds = array<i64: 1, 64>}, {pipeline_mode = #tpu.pipeline_mode<synchronous>, transform_indices = @transform_5, window_bounds = array<i64: 64, 9>}, {pipeline_mode = #tpu.pipeline_mode<synchronous>, transform_indices = @transform_6, window_bounds = array<i64: 1, 9>}, {transform_indices = @transform_7, window_bounds = array<i64: 8, 9>}]} {
    %c0 = arith.constant 0 : index
    %c0_0 = arith.constant 0 : index
    %0 = vector.load %arg1[%c0, %c0_0] : memref<8x16xf32, #tpu.memory_space<vmem>>, vector<8x16xf32>
    %c0_1 = arith.constant 0 : index
    %c0_2 = arith.constant 0 : index
    %1 = vector.load %arg2[%c0_1, %c0_2] : memref<16x64xf32, #tpu.memory_space<vmem>>, vector<16x64xf32>
    %cst = arith.constant dense<0.000000e+00> : vector<8x64xf32>
    %2 = tpu.matmul %0, %1, %cst {dimension_numbers = #tpu.dot_dimension_numbers<[1], [0], [0], [1], [0, 0, 1, 1], [], []>} : vector<8x16xf32>, vector<16x64xf32>, vector<8x64xf32> -> vector<8x64xf32>
    %c0_3 = arith.constant 0 : index
    %c0_4 = arith.constant 0 : index
    %3 = vector.load %arg3[%c0_3, %c0_4] : memref<1x64xf32, #tpu.memory_space<vmem>>, vector<1x64xf32>
    %4 = vector.broadcast %3 : vector<1x64xf32> to vector<8x64xf32>
    %5 = arith.addf %2, %4 : vector<8x64xf32>
    %6 = math.tanh %5 : vector<8x64xf32>
    %c0_5 = arith.constant 0 : index
    %c0_6 = arith.constant 0 : index
    %7 = vector.load %arg4[%c0_5, %c0_6] : memref<64x64xf32, #tpu.memory_space<vmem>>, vector<64x64xf32>
    %cst_7 = arith.constant dense<0.000000e+00> : vector<8x64xf32>
    %8 = tpu.matmul %6, %7, %cst_7 {dimension_numbers = #tpu.dot_dimension_numbers<[1], [0], [0], [1], [0, 0, 1, 1], [], []>} : vector<8x64xf32>, vector<64x64xf32>, vector<8x64xf32> -> vector<8x64xf32>
    %c0_8 = arith.constant 0 : index
    %c0_9 = arith.constant 0 : index
    %9 = vector.load %arg5[%c0_8, %c0_9] : memref<1x64xf32, #tpu.memory_space<vmem>>, vector<1x64xf32>
    %10 = vector.broadcast %9 : vector<1x64xf32> to vector<8x64xf32>
    %11 = arith.addf %8, %10 : vector<8x64xf32>
    %12 = math.tanh %11 : vector<8x64xf32>
    %c0_10 = arith.constant 0 : index
    %c0_11 = arith.constant 0 : index
    %13 = vector.load %arg6[%c0_10, %c0_11] : memref<64x9xf32, #tpu.memory_space<vmem>>, vector<64x9xf32>
    %cst_12 = arith.constant dense<0.000000e+00> : vector<8x9xf32>
    %14 = tpu.matmul %12, %13, %cst_12 {dimension_numbers = #tpu.dot_dimension_numbers<[1], [0], [0], [1], [0, 0, 1, 1], [], []>} : vector<8x64xf32>, vector<64x9xf32>, vector<8x9xf32> -> vector<8x9xf32>
    %c0_13 = arith.constant 0 : index
    %c0_14 = arith.constant 0 : index
    %15 = vector.load %arg7[%c0_13, %c0_14] : memref<1x9xf32, #tpu.memory_space<vmem>>, vector<1x9xf32>
    %16 = vector.broadcast %15 : vector<1x9xf32> to vector<8x9xf32>
    %17 = arith.addf %14, %16 : vector<8x9xf32>
    %c0_15 = arith.constant 0 : index
    %c0_16 = arith.constant 0 : index
    %18 = vector.load %arg8[%c0_15, %c0_16] : memref<8x9xf32, #tpu.memory_space<vmem>>, vector<8x9xf32>
    tpu.vector_store %arg8[%c0_15, %c0_16], %17 {strides = array<i32>} : memref<8x9xf32, #tpu.memory_space<vmem>>, vector<8x9xf32>,
    return
  }
  func.func @transform_0(%arg0: i32) -> (i32, i32) {
    %c0_i32 = arith.constant 0 : i32
    %c0_i32_0 = arith.constant 0 : i32
    return %arg0, %c0_i32 : i32, i32
  }
  func.func @transform_1(%arg0: i32) -> (i32, i32) {
    %c0_i32 = arith.constant 0 : i32
    %c0_i32_0 = arith.constant 0 : i32
    %c0_i32_1 = arith.constant 0 : i32
    return %c0_i32, %c0_i32_0 : i32, i32
  }
  func.func @transform_2(%arg0: i32) -> (i32, i32) {
    %c0_i32 = arith.constant 0 : i32
    %c0_i32_0 = arith.constant 0 : i32
    %c0_i32_1 = arith.constant 0 : i32
    return %c0_i32, %c0_i32_0 : i32, i32
  }
  func.func @transform_3(%arg0: i32) -> (i32, i32) {
    %c0_i32 = arith.constant 0 : i32
    %c0_i32_0 = arith.constant 0 : i32
    %c0_i32_1 = arith.constant 0 : i32
    return %c0_i32, %c0_i32_0 : i32, i32
  }
  func.func @transform_4(%arg0: i32) -> (i32, i32) {
    %c0_i32 = arith.constant 0 : i32
    %c0_i32_0 = arith.constant 0 : i32
    %c0_i32_1 = arith.constant 0 : i32
    return %c0_i32, %c0_i32_0 : i32, i32
  }
  func.func @transform_5(%arg0: i32) -> (i32, i32) {
    %c0_i32 = arith.constant 0 : i32
    %c0_i32_0 = arith.constant 0 : i32
    %c0_i32_1 = arith.constant 0 : i32
    return %c0_i32, %c0_i32_0 : i32, i32
  }
  func.func @transform_6(%arg0: i32) -> (i32, i32) {
    %c0_i32 = arith.constant 0 : i32
    %c0_i32_0 = arith.constant 0 : i32
    %c0_i32_1 = arith.constant 0 : i32
    return %c0_i32, %c0_i32_0 : i32, i32
  }
  func.func @transform_7(%arg0: i32) -> (i32, i32) {
    %c0_i32 = arith.constant 0 : i32
    %c0_i32_0 = arith.constant 0 : i32
    return %arg0, %c0_i32 : i32, i32
  }
}

</mosaic_0001>

<llo_original>
// kernel: tpu_custom_call.1
$region0: #{tpu_custom_call.1}
  #allocation0 [shape = 'u32[]', space=smem, size = 0x4, offset = 0x4, fixed_abs, tag = 'smem constant byte address 0x4 - core index']
  #allocation1 [shape = 'u32[144,128]{1,0:T(1,128)}', space=vmem, size = 0x12000, scoped, tag = 'internal scratch']
  %s0 = inlined_call_operand.hbm [shape: f32[8,16], index: 0, kind: input, shape index: {}]
  %s1 = inlined_call_operand.vmem [shape: f32[16,64], index: 1, kind: input, shape index: {}]
  %s2 = inlined_call_operand.vmem [shape: f32[1,64], index: 2, kind: input, shape index: {}]
  %s3 = inlined_call_operand.vmem [shape: f32[64,64], index: 3, kind: input, shape index: {}]
  %s4 = inlined_call_operand.vmem [shape: f32[1,64], index: 4, kind: input, shape index: {}]
  %s5 = inlined_call_operand.vmem [shape: f32[64,9], index: 5, kind: input, shape index: {}]
  %s6 = inlined_call_operand.vmem [shape: f32[1,9], index: 6, kind: input, shape index: {}]
  %s7 = inlined_call_operand.hbm [shape: f32[8,9], index: 7, kind: output, shape index: {}]
  %s8 = sld [smem:[#allocation0]]
  $region42: #{tpu_custom_call.1} parent=0
    _
  %s10 = ssub.s32 1, %s8
  %s11 = scalar_select 0, %s10, %s8
  $region1: #{tpu_custom_call.1} parent=0
    #allocation2 [shape = 'u8[4096]{0}', space=vmem, size = 0x1000, scoped, tag = 'input window, operand 0, single buffered']
    #allocation3 [shape = 's32[1]{0}', space=sflag, size = 0x4, scoped, tag = 'scoped memory for tpu_custom_call.1']
    #allocation4 [shape = 's32[1]{0}', space=sflag, size = 0x4, scoped, tag = 'scoped memory for tpu_custom_call.1']
    #allocation5 [shape = 'u8[4096]{0}', space=vmem, size = 0x1000, scoped, tag = 'output window, operand 0, single buffered']
    %12 = vsyncpa [#allocation3], 0
    %13 = vsyncpa [#allocation4], 0
    // Predicated region
    $region2: #{tpu_custom_call.1} parent=1 // pred_check
      _
    $region3: #{tpu_custom_call.1} parent=1 // pred_check_branch
      %15 = sbr.rel (0) target = $region5
    $region4: #{tpu_custom_call.1} parent=1 // pred_region
      %s17 = ssub.s32 128, 128
      %18 = vsyncadd [#allocation3], %s17
      %s20 = sshll.u32 [#allocation2], 4
      %s21 = int_to_ptr.vmem [resolvable:$true] %s20
      %23 = dma.hbm_to_vmem [thread:$0]  %s0, 128, %s21, [#allocation3]
    $region5: #{tpu_custom_call.1} parent=1 // pred_fallthru
      _
    // Predicated region
    $region6: #{tpu_custom_call.1} parent=1 // pred_check
      _
    $region7: #{tpu_custom_call.1} parent=1 // pred_check_branch
      %25 = sbr.rel (0) target = $region9
    $region8: #{tpu_custom_call.1} parent=1 // pred_region
      _
    $region9: #{tpu_custom_call.1} parent=1 // pred_fallthru
      _
    // Predicated region
    $region10: #{tpu_custom_call.1} parent=1 // pred_check
      _
    $region11: #{tpu_custom_call.1} parent=1 // pred_check_branch
      %27 = sbr.rel (0) target = $region13
    $region12: #{tpu_custom_call.1} parent=1 // pred_region
      _
    $region13: #{tpu_custom_call.1} parent=1 // pred_fallthru
      _
    // Predicated region
    $region14: #{tpu_custom_call.1} parent=1 // pred_check
      _
    $region15: #{tpu_custom_call.1} parent=1 // pred_check_branch
      %29 = sbr.rel (0) target = $region17
    $region16: #{tpu_custom_call.1} parent=1 // pred_region
      _
    $region17: #{tpu_custom_call.1} parent=1 // pred_fallthru
      _
    // Predicated region
    $region18: #{tpu_custom_call.1} parent=1 // pred_check
      _
    $region19: #{tpu_custom_call.1} parent=1 // pred_check_branch
      %31 = sbr.rel (0) target = $region21
    $region20: #{tpu_custom_call.1} parent=1 // pred_region
      _
    $region21: #{tpu_custom_call.1} parent=1 // pred_fallthru
      _
    // Predicated region
    $region22: #{tpu_custom_call.1} parent=1 // pred_check
      _
    $region23: #{tpu_custom_call.1} parent=1 // pred_check_branch
      %33 = sbr.rel (0) target = $region25
    $region24: #{tpu_custom_call.1} parent=1 // pred_region
      _
    $region25: #{tpu_custom_call.1} parent=1 // pred_fallthru
      _
    // Predicated region
    $region26: #{tpu_custom_call.1} parent=1 // pred_check
      _
    $region27: #{tpu_custom_call.1} parent=1 // pred_check_branch
      %35 = sbr.rel (0) target = $region29
    $region28: #{tpu_custom_call.1} parent=1 // pred_region
      _
    $region29: #{tpu_custom_call.1} parent=1 // pred_fallthru
      _
    // Predicated region
    $region30: #{tpu_custom_call.1} parent=1 // pred_check
      _
    $region31: #{tpu_custom_call.1} parent=1 // pred_check_branch
      %37 = sbr.rel (0) target = $region33
    $region32: #{tpu_custom_call.1} parent=1 // pred_region
      %38 = dma.done [#allocation3], 128
    $region33: #{tpu_custom_call.1} parent=1 // pred_fallthru
      _
    %v39 = vld [vmem:[#allocation2] sm:$0xff]
    %v40 = vld [vmem:[%s1] sm:$0xff]
    %v41 = vld [vmem:[%s1 + $0x8] sm:$0xff]
    %v42 = vld [vmem:[%s2] sm:$0x1]
    %v44 = vlaneseq
    %v45 = vshrl.u32 %v44, 7
    %v46 = vsub.s32 0, %v45
    %v47 = vrot.slane %v42, %v46
    %vm49 = vcmask 130048
    %v51 = vsel %vm49, %v39, 0
    %53 = vmatprep.subr.mxu0 0.0
    %54 = vmatpush1.msra.mxu0 %v40
    %55 = vmatprep.subr.mxu0 0.0
    %56 = vmatpush1.msra.mxu0 %v41
    %57 = vmatprep.subr.mxu0 0.0
    %58 = vmatpush1.msra.mxu0 0.0
    %59 = vmatprep.subr.mxu0 0.0
    %60 = vmatpush1.msra.mxu0 0.0
    %61 = vmatprep.subr.mxu0 0.0
    %62 = vmatpush1.msra.mxu0 0.0
    %63 = vmatprep.subr.mxu0 0.0
    %64 = vmatpush1.msra.mxu0 0.0
    %65 = vmatprep.subr.mxu0 0.0
    %66 = vmatpush1.msra.mxu0 0.0
    %67 = vmatprep.subr.mxu0 0.0
    %68 = vmatpush1.msra.mxu0 0.0
    %69 = vmatprep.subr.mxu0 0.0
    %70 = vmatpush1.msra.mxu0 0.0
    %71 = vmatprep.subr.mxu0 0.0
    %72 = vmatpush1.msra.mxu0 0.0
    %73 = vmatprep.subr.mxu0 0.0
    %74 = vmatpush1.msra.mxu0 0.0
    %75 = vmatprep.subr.mxu0 0.0
    %76 = vmatpush1.msra.mxu0 0.0
    %77 = vmatprep.subr.mxu0 0.0
    %78 = vmatpush1.msra.mxu0 0.0
    %79 = vmatprep.subr.mxu0 0.0
    %80 = vmatpush1.msra.mxu0 0.0
    %81 = vmatprep.subr.mxu0 0.0
    %82 = vmatpush1.msra.mxu0 0.0
    %83 = vmatprep.subr.mxu0 0.0
    %84 = vmatpush1.msra.mxu0 0.0
    %85 = vmatprep.subr.mxu0 0.0
    %86 = vmatpush1.msra.mxu0 0.0
    %87 = vmatprep.subr.mxu0 0.0
    %88 = vmatpush1.msra.mxu0 0.0
    %89 = vmatprep.subr.mxu0 0.0
    %90 = vmatpush1.msra.mxu0 0.0
    %91 = vmatprep.subr.mxu0 0.0
    %92 = vmatpush1.msra.mxu0 0.0
    %93 = vmatprep.subr.mxu0 0.0
    %94 = vmatpush1.msra.mxu0 0.0
    %95 = vmatprep.subr.mxu0 0.0
    %96 = vmatpush1.msra.mxu0 0.0
    %97 = vmatprep.subr.mxu0 0.0
    %98 = vmatpush1.msra.mxu0 0.0
    %99 = vmatprep.subr.mxu0 0.0
    %100 = vmatpush1.msra.mxu0 0.0
    %101 = vmatprep.subr.mxu0 0.0
    %102 = vmatpush1.msra.mxu0 0.0
    %103 = vmatprep.subr.mxu0 0.0
    %104 = vmatpush1.msra.mxu0 0.0
    %105 = vmatprep.subr.mxu0 0.0
    %106 = vmatpush1.msra.mxu0 0.0
    %107 = vmatprep.subr.mxu0 0.0
    %108 = vmatpush1.msra.mxu0 0.0
    %109 = vmatprep.subr.mxu0 0.0
    %110 = vmatpush1.msra.mxu0 0.0
    %111 = vmatprep.subr.mxu0 0.0
    %112 = vmatpush1.msra.mxu0 0.0
    %113 = vmatprep.subr.mxu0 0.0
    %114 = vmatpush1.msra.mxu0 0.0
    %115 = vmatprep.subr.mxu0 0.0
    %116 = vmatpush1.msra.mxu0 0.0
    %117 = vmatprep.mubr.f32.mxu0 0.0
    %118 = vmatmul.mubr.f32.gmra.mrb[0].mxu0 %v51
    %v119 = vpop.f32.mrb[0].mxu0
    %v120 = vadd.f32 %v47, %v119
    %v121 = vpop.f32.mrb[0].mxu0
    %122 = vdwg.mxu0
    %v123 = vtanh.pop %v120
    %v124 = vld [vmem:[%s3] sm:$0xff]
    %v125 = vld [vmem:[%s3 + $0x8] sm:$0xff]
    %v126 = vld [vmem:[%s3 + $0x10] sm:$0xff]
    %v127 = vld [vmem:[%s3 + $0x18] sm:$0xff]
    %v128 = vld [vmem:[%s3 + $0x20] sm:$0xff]
    %v129 = vld [vmem:[%s3 + $0x28] sm:$0xff]
    %v130 = vld [vmem:[%s3 + $0x30] sm:$0xff]
    %v131 = vld [vmem:[%s3 + $0x38] sm:$0xff]
    %v132 = vld [vmem:[%s4] sm:$0x1]
    %v134 = vlaneseq
    %v135 = vshrl.u32 %v134, 7
    %v136 = vsub.s32 0, %v135
    %v137 = vrot.slane %v132, %v136
    %vm139 = vcmask 523264
    %v141 = vsel %vm139, %v123, 0
    %143 = vmatprep.subr.mxu0 0.0
    %144 = vmatpush1.msra.mxu0 %v124
    %145 = vmatprep.subr.mxu0 0.0
    %146 = vmatpush1.msra.mxu0 %v125
    %147 = vmatprep.subr.mxu0 0.0
    %148 = vmatpush1.msra.mxu0 %v126
    %149 = vmatprep.subr.mxu0 0.0
    %150 = vmatpush1.msra.mxu0 %v127
    %151 = vmatprep.subr.mxu0 0.0
    %152 = vmatpush1.msra.mxu0 %v128
    %153 = vmatprep.subr.mxu0 0.0
    %154 = vmatpush1.msra.mxu0 %v129
    %155 = vmatprep.subr.mxu0 0.0
    %156 = vmatpush1.msra.mxu0 %v130
    %157 = vmatprep.subr.mxu0 0.0
    %158 = vmatpush1.msra.mxu0 %v131
    %159 = vmatprep.subr.mxu0 0.0
    %160 = vmatpush1.msra.mxu0 0.0
    %161 = vmatprep.subr.mxu0 0.0
    %162 = vmatpush1.msra.mxu0 0.0
    %163 = vmatprep.subr.mxu0 0.0
    %164 = vmatpush1.msra.mxu0 0.0
    %165 = vmatprep.subr.mxu0 0.0
    %166 = vmatpush1.msra.mxu0 0.0
    %167 = vmatprep.subr.mxu0 0.0
    %168 = vmatpush1.msra.mxu0 0.0
    %169 = vmatprep.subr.mxu0 0.0
    %170 = vmatpush1.msra.mxu0 0.0
    %171 = vmatprep.subr.mxu0 0.0
    %172 = vmatpush1.msra.mxu0 0.0
    %173 = vmatprep.subr.mxu0 0.0
    %174 = vmatpush1.msra.mxu0 0.0
    %175 = vmatprep.subr.mxu0 0.0
    %176 = vmatpush1.msra.mxu0 0.0
    %177 = vmatprep.subr.mxu0 0.0
    %178 = vmatpush1.msra.mxu0 0.0
    %179 = vmatprep.subr.mxu0 0.0
    %180 = vmatpush1.msra.mxu0 0.0
    %181 = vmatprep.subr.mxu0 0.0
    %182 = vmatpush1.msra.mxu0 0.0
    %183 = vmatprep.subr.mxu0 0.0
    %184 = vmatpush1.msra.mxu0 0.0
    %185 = vmatprep.subr.mxu0 0.0
    %186 = vmatpush1.msra.mxu0 0.0
    %187 = vmatprep.subr.mxu0 0.0
    %188 = vmatpush1.msra.mxu0 0.0
    %189 = vmatprep.subr.mxu0 0.0
    %190 = vmatpush1.msra.mxu0 0.0
    %191 = vmatprep.subr.mxu0 0.0
    %192 = vmatpush1.msra.mxu0 0.0
    %193 = vmatprep.subr.mxu0 0.0
    %194 = vmatpush1.msra.mxu0 0.0
    %195 = vmatprep.subr.mxu0 0.0
    %196 = vmatpush1.msra.mxu0 0.0
    %197 = vmatprep.subr.mxu0 0.0
    %198 = vmatpush1.msra.mxu0 0.0
    %199 = vmatprep.subr.mxu0 0.0
    %200 = vmatpush1.msra.mxu0 0.0
    %201 = vmatprep.subr.mxu0 0.0
    %202 = vmatpush1.msra.mxu0 0.0
    %203 = vmatprep.subr.mxu0 0.0
    %204 = vmatpush1.msra.mxu0 0.0
    %205 = vmatprep.subr.mxu0 0.0
    %206 = vmatpush1.msra.mxu0 0.0
    %207 = vmatprep.mubr.f32.mxu0 0.0
    %208 = vmatmul.mubr.f32.gmra.mrb[0].mxu0 %v141
    %v209 = vpop.f32.mrb[0].mxu0
    %v210 = vadd.f32 %v137, %v209
    %v211 = vpop.f32.mrb[0].mxu0
    %212 = vdwg.mxu0
    %v213 = vtanh.pop %v210
    %v214 = vld [vmem:[%s5] sm:$0xff]
    %v215 = vld [vmem:[%s5 + $0x8] sm:$0xff]
    %v216 = vld [vmem:[%s5 + $0x10] sm:$0xff]
    %v217 = vld [vmem:[%s5 + $0x18] sm:$0xff]
    %v218 = vld [vmem:[%s5 + $0x20] sm:$0xff]
    %v219 = vld [vmem:[%s5 + $0x28] sm:$0xff]
    %v220 = vld [vmem:[%s5 + $0x30] sm:$0xff]
    %v221 = vld [vmem:[%s5 + $0x38] sm:$0xff]
    %v222 = vld [vmem:[%s6] sm:$0x1]
    %v224 = vlaneseq
    %v225 = vshrl.u32 %v224, 7
    %v226 = vsub.s32 0, %v225
    %v227 = vrot.slane %v222, %v226
    %v230 = vsel %vm139, %v213, 0
    %232 = vmatprep.subr.mxu0 0.0
    %233 = vmatpush1.msra.mxu0 %v214
    %234 = vmatprep.subr.mxu0 0.0
    %235 = vmatpush1.msra.mxu0 %v215
    %236 = vmatprep.subr.mxu0 0.0
    %237 = vmatpush1.msra.mxu0 %v216
    %238 = vmatprep.subr.mxu0 0.0
    %239 = vmatpush1.msra.mxu0 %v217
    %240 = vmatprep.subr.mxu0 0.0
    %241 = vmatpush1.msra.mxu0 %v218
    %242 = vmatprep.subr.mxu0 0.0
    %243 = vmatpush1.msra.mxu0 %v219
    %244 = vmatprep.subr.mxu0 0.0
    %245 = vmatpush1.msra.mxu0 %v220
    %246 = vmatprep.subr.mxu0 0.0
    %247 = vmatpush1.msra.mxu0 %v221
    %248 = vmatprep.subr.mxu0 0.0
    %249 = vmatpush1.msra.mxu0 0.0
    %250 = vmatprep.subr.mxu0 0.0
    %251 = vmatpush1.msra.mxu0 0.0
    %252 = vmatprep.subr.mxu0 0.0
    %253 = vmatpush1.msra.mxu0 0.0
    %254 = vmatprep.subr.mxu0 0.0
    %255 = vmatpush1.msra.mxu0 0.0
    %256 = vmatprep.subr.mxu0 0.0
    %257 = vmatpush1.msra.mxu0 0.0
    %258 = vmatprep.subr.mxu0 0.0
    %259 = vmatpush1.msra.mxu0 0.0
    %260 = vmatprep.subr.mxu0 0.0
    %261 = vmatpush1.msra.mxu0 0.0
    %262 = vmatprep.subr.mxu0 0.0
    %263 = vmatpush1.msra.mxu0 0.0
    %264 = vmatprep.subr.mxu0 0.0
    %265 = vmatpush1.msra.mxu0 0.0
    %266 = vmatprep.subr.mxu0 0.0
    %267 = vmatpush1.msra.mxu0 0.0
    %268 = vmatprep.subr.mxu0 0.0
    %269 = vmatpush1.msra.mxu0 0.0
    %270 = vmatprep.subr.mxu0 0.0
    %271 = vmatpush1.msra.mxu0 0.0
    %272 = vmatprep.subr.mxu0 0.0
    %273 = vmatpush1.msra.mxu0 0.0
    %274 = vmatprep.subr.mxu0 0.0
    %275 = vmatpush1.msra.mxu0 0.0
    %276 = vmatprep.subr.mxu0 0.0
    %277 = vmatpush1.msra.mxu0 0.0
    %278 = vmatprep.subr.mxu0 0.0
    %279 = vmatpush1.msra.mxu0 0.0
    %280 = vmatprep.subr.mxu0 0.0
    %281 = vmatpush1.msra.mxu0 0.0
    %282 = vmatprep.subr.mxu0 0.0
    %283 = vmatpush1.msra.mxu0 0.0
    %284 = vmatprep.subr.mxu0 0.0
    %285 = vmatpush1.msra.mxu0 0.0
    %286 = vmatprep.subr.mxu0 0.0
    %287 = vmatpush1.msra.mxu0 0.0
    %288 = vmatprep.subr.mxu0 0.0
    %289 = vmatpush1.msra.mxu0 0.0
    %290 = vmatprep.subr.mxu0 0.0
    %291 = vmatpush1.msra.mxu0 0.0
    %292 = vmatprep.subr.mxu0 0.0
    %293 = vmatpush1.msra.mxu0 0.0
    %294 = vmatprep.subr.mxu0 0.0
    %295 = vmatpush1.msra.mxu0 0.0
    %296 = vmatprep.mubr.f32.mxu0 0.0
    %297 = vmatmul.mubr.f32.gmra.mrb[0].mxu0 %v230
    %v298 = vpop.f32.mrb[0].mxu0
    %v299 = vadd.f32 %v227, %v298
    %v300 = vpop.f32.mrb[0].mxu0
    %301 = vdwg.mxu0
    %vm302 = vcmask 72704
    %303 = vst.msk [vmem:[#allocation5] sm:$0xff] %vm302, %v299
    // Predicated region
    $region34: #{tpu_custom_call.1} parent=1 // pred_check
      _
    $region35: #{tpu_custom_call.1} parent=1 // pred_check_branch
      %305 = sbr.rel (0) target = $region37
    $region36: #{tpu_custom_call.1} parent=1 // pred_region
      %s307 = ssub.s32 128, 128
      %308 = vsyncadd [#allocation4], %s307
      %s310 = sshll.u32 [#allocation5], 4
      %s311 = int_to_ptr.vmem [resolvable:$true] %s310
      %313 = dma.vmem_to_hbm [thread:$0]  %s311, 128, %s7, [#allocation4]
    $region37: #{tpu_custom_call.1} parent=1 // pred_fallthru
      _
    // Predicated region
    $region38: #{tpu_custom_call.1} parent=1 // pred_check
      _
    $region39: #{tpu_custom_call.1} parent=1 // pred_check_branch
      %315 = sbr.rel (0) target = $region41
    $region40: #{tpu_custom_call.1} parent=1 // pred_region
      %316 = dma.done [#allocation4], 128
    $region41: #{tpu_custom_call.1} parent=1 // pred_fallthru
      _
    %317 = vsyncpa [#allocation3], 1
    %318 = vsyncpa [#allocation4], 1

</llo_original>
